<compile_context>
chip_gen: v6e
topology: v6e:2x2x1
jax: 0.10.0
libtpu: 0.0.40
codegen_flags: <defaults>
</compile_context>

<pallas_src>
import jax
import jax.numpy as jnp
from jax.experimental import pallas as pl
from jax.experimental.pallas import tpu as pltpu


_LANE = 128
_SUBLANE = 8


def _round_up(a, b):
    return (a + b - 1) // b * b


def _vmem_capacity_bytes():
    """Physical VMEM per TensorCore; conservative fallback if query fails."""
    try:
        info = pltpu.get_tpu_info()
        cap = getattr(info, "vmem_capacity_bytes", None)
        if cap:
            return int(cap)
    except Exception:
        pass
    return 64 * 1024 * 1024  # v7x per-TC VMEM (smallest of the targets)


def _vmem_estimate_bytes(tm, F, H, O, w2_itemsize):
    """Double-buffered VMEM footprint of one grid step (lane/sublane padded)."""
    def padl(n):
        return _round_up(max(n, 1), _LANE)

    def pads(n):
        return _round_up(max(n, 1), _SUBLANE)

    x_b = 2 * tm * padl(F) * 4            # x row tile (F=3 padded to 128 lanes)
    out_b = 2 * tm * padl(O) * 4          # output row tile
    w1_b = 2 * pads(F) * padl(H) * 4      # W1 (stays f32; first layer on VPU)
    b1_b = 2 * pads(1) * padl(H) * 4
    w2_b = 2 * pads(H) * padl(O) * w2_itemsize
    b2_b = 2 * pads(1) * padl(O) * 4
    h_b = tm * padl(H) * 4                # f32 hidden activation (scratch)
    h2_b = tm * padl(H) * w2_itemsize     # cast copy fed to the 2nd matmul
    return x_b + out_b + w1_b + b1_b + w2_b + b2_b + h_b + h2_b


def pos2weight_kernel(x_ref, w1_ref, b1_ref, w2_ref, b2_ref, o_ref):
    """One row tile: relu(x @ W1 + b1) @ W2 + b2, written straight to the
    unpadded (N, O) output (the final partial row tile is masked by Pallas)."""
    x = x_ref[...].astype(jnp.float32)        # (tm, F), F == 3
    w1 = w1_ref[...].astype(jnp.float32)      # (F, H)
    F = x.shape[1]

    # K=3 is far too small for the MXU: do the first layer as F broadcast FMAs
    # on the VPU (kernel is HBM-bound, VPU slots are free).
    acc = x[:, 0:1] * w1[0:1, :]
    for f in range(1, F):
        acc = acc + x[:, f:f + 1] * w1[f:f + 1, :]
    h = jnp.maximum(acc + b1_ref[...].astype(jnp.float32), 0.0)   # (tm, H) f32

    w2 = w2_ref[...]                          # (H, O), f32 or bf16
    out = jnp.dot(h.astype(w2.dtype), w2, preferred_element_type=jnp.float32)
    out = out + b2_ref[...].astype(jnp.float32)
    o_ref[...] = out.astype(o_ref.dtype)


def pos2weight(x, w1, b1, w2, b2, *, tm=4096, use_bf16=False):
    """Apply the Pos2Weight meta_block to x of shape (N, 3).

    The output is written directly to an unpadded (N, O) buffer (no wrapper
    pad + slice).  W1/b1/W2/b2 stay resident in VMEM; the grid only tiles the
    rows of x, with a generation-aware VMEM budget.
    """
    N, F = x.shape
    H = w1.shape[1]
    O = w2.shape[1]

    w2_itemsize = 2 if use_bf16 else 4
    if use_bf16:
        # Only the K=256 matmul goes through the MXU; keep x / W1 / the
        # epilogue in f32 (v5e has no bf16 VPU path, and the positional
        # coordinates in x keep full mantissa this way).
        w2 = w2.astype(jnp.bfloat16)

    # ---- generation-aware row-tile sizing -----------------------------------
    vmem_cap = _vmem_capacity_bytes()
    budget = (vmem_cap * 2) // 5               # ~40% of physical VMEM
    tm = max(_SUBLANE, min(tm, _round_up(N, _SUBLANE)))
    tm = _round_up(tm, _SUBLANE)
    while _vmem_estimate_bytes(tm, F, H, O, w2_itemsize) > budget and tm > 64:
        tm = max(64, _round_up(tm // 2, _SUBLANE))
    # TODO(synk): for very large O (> ~2048, i.e. large inC*outC) add an output
    # column grid axis instead of holding all of W2 resident.

    est = _vmem_estimate_bytes(tm, F, H, O, w2_itemsize)
    vmem_limit = int(min(vmem_cap * 3 // 4, est + (16 << 20)))
    vmem_limit = max(vmem_limit, 32 << 20)
    vmem_limit = min(vmem_limit, vmem_cap)

    grid = (pl.cdiv(N, tm),)

    cost = pl.CostEstimate(
        flops=2 * N * (F * H + H * O),
        transcendentals=0,
        bytes_accessed=(N * F * 4 + N * O * 4
                        + F * H * 4 + H * O * w2_itemsize + H * 4 + O * 4),
    )

    out = pl.pallas_call(
        pos2weight_kernel,
        out_shape=jax.ShapeDtypeStruct((N, O), x.dtype),
        grid_spec=pltpu.PrefetchScalarGridSpec(
            num_scalar_prefetch=0,
            grid=grid,
            in_specs=[
                pl.BlockSpec((tm, F), lambda i: (i, 0)),   # x row tile
                pl.BlockSpec((F, H), lambda i: (0, 0)),    # W1 (resident, f32)
                pl.BlockSpec((1, H), lambda i: (0, 0)),    # b1
                pl.BlockSpec((H, O), lambda i: (0, 0)),    # W2 (resident)
                pl.BlockSpec((1, O), lambda i: (0, 0)),    # b2
            ],
            out_specs=pl.BlockSpec((tm, O), lambda i: (i, 0)),
        ),
        compiler_params=pltpu.CompilerParams(
            dimension_semantics=("parallel",),
            vmem_limit_bytes=vmem_limit,
        ),
        cost_estimate=cost,
    )(x, w1, b1, w2, b2)

    return out


def init_pos2weight_params(key, inC, kernel_size=3, outC=3, dtype=jnp.float32):
    """Deterministic init mimicking PyTorch's default Linear init (uniform +/- 1/sqrt(fan_in))."""
    hidden = 256
    out_dim = kernel_size * kernel_size * inC * outC
    k1, k2, k3, k4 = jax.random.split(key, 4)

    bound1 = 1.0 / jnp.sqrt(3.0)
    w1 = jax.random.uniform(k1, (3, hidden), dtype, -bound1, bound1)
    b1 = jax.random.uniform(k2, (1, hidden), dtype, -bound1, bound1)

    bound2 = 1.0 / jnp.sqrt(float(hidden))
    w2 = jax.random.uniform(k3, (hidden, out_dim), dtype, -bound2, bound2)
    b2 = jax.random.uniform(k4, (1, out_dim), dtype, -bound2, bound2)
    return w1, b1, w2, b2


if __name__ == "__main__":
    key = jax.random.PRNGKey(0)
    kx, kp, kx2 = jax.random.split(key, 3)

    # Module config: inC=4, kernel_size=3, outC=3 -> out_dim = 9*4*3 = 108
    inC, kernel_size, outC = 4, 3, 3
    out_dim = kernel_size * kernel_size * inC * outC
    w1, b1, w2, b2 = init_pos2weight_params(kp, inC, kernel_size, outC)

    def ref_fn(xv):
        return jnp.maximum(xv @ w1 + b1, 0.0) @ w2 + b2

    # f32 path, single row tile.
    N = 64
    x = jax.random.normal(kx, (N, 3), jnp.float32)
    out = jax.block_until_ready(pos2weight(x, w1, b1, w2, b2))
    assert out.shape == (N, out_dim)
    assert jnp.allclose(out, ref_fn(x), atol=1e-3, rtol=1e-3), "f32 mismatch vs reference"

    # Row count that is not a multiple of the sublane tile: exercises the
    # masked final row tile of the unpadded output.
    N2 = 203
    x2 = jax.random.normal(kx2, (N2, 3), jnp.float32)
    out2 = jax.block_until_ready(pos2weight(x2, w1, b1, w2, b2))
    assert out2.shape == (N2, out_dim)
    assert jnp.allclose(out2, ref_fn(x2), atol=1e-3, rtol=1e-3), "partial-tile mismatch vs reference"

    # bf16 MXU operands for the second matmul (f32 accumulate + epilogue).
    out_bf16 = jax.block_until_ready(pos2weight(x, w1, b1, w2, b2, use_bf16=True))
    assert out_bf16.shape == (N, out_dim)
    assert jnp.allclose(out_bf16, ref_fn(x), atol=5e-2, rtol=5e-2), "bf16 mismatch vs reference"

    print("KERNEL_OK")
</pallas_src>

<mosaic_0001>
module attributes {stable_mosaic.version = 11 : i64} {
  func.func @pos2weight_kernel(%arg0: i32, %arg1: memref<64x3xf32, #tpu.memory_space<vmem>>, %arg2: memref<3x256xf32, #tpu.memory_space<vmem>>, %arg3: memref<1x256xf32, #tpu.memory_space<vmem>>, %arg4: memref<256x108xf32, #tpu.memory_space<vmem>>, %arg5: memref<1x108xf32, #tpu.memory_space<vmem>>, %arg6: memref<64x108xf32, #tpu.memory_space<vmem>>) attributes {dimension_semantics = [#tpu.dimension_semantics<parallel>], iteration_bounds = array<i64: 1>, scalar_prefetch = 0 : i64, scratch_operands = 0 : i64, tpu.core_type = #tpu.core_type<tc>, window_params = [{transform_indices = @transform_0, window_bounds = array<i64: 64, 3>}, {pipeline_mode = #tpu.pipeline_mode<synchronous>, transform_indices = @transform_1, window_bounds = array<i64: 3, 256>}, {pipeline_mode = #tpu.pipeline_mode<synchronous>, transform_indices = @transform_2, window_bounds = array<i64: 1, 256>}, {pipeline_mode = #tpu.pipeline_mode<synchronous>, transform_indices = @transform_3, window_bounds = array<i64: 256, 108>}, {pipeline_mode = #tpu.pipeline_mode<synchronous>, transform_indices = @transform_4, window_bounds = array<i64: 1, 108>}, {transform_indices = @transform_5, window_bounds = array<i64: 64, 108>}]} {
    %c0 = arith.constant 0 : index
    %c0_0 = arith.constant 0 : index
    %0 = vector.load %arg1[%c0, %c0_0] : memref<64x3xf32, #tpu.memory_space<vmem>>, vector<64x3xf32>
    %c0_1 = arith.constant 0 : index
    %c0_2 = arith.constant 0 : index
    %1 = vector.load %arg2[%c0_1, %c0_2] : memref<3x256xf32, #tpu.memory_space<vmem>>, vector<3x256xf32>
    %2 = vector.extract_strided_slice %0 {offsets = [0, 0], sizes = [64, 1], strides = [1, 1]} : vector<64x3xf32> to vector<64x1xf32>
    %3 = vector.extract_strided_slice %1 {offsets = [0, 0], sizes = [1, 256], strides = [1, 1]} : vector<3x256xf32> to vector<1x256xf32>
    %4 = vector.broadcast %2 : vector<64x1xf32> to vector<64x256xf32>
    %5 = vector.broadcast %3 : vector<1x256xf32> to vector<64x256xf32>
    %6 = arith.mulf %4, %5 : vector<64x256xf32>
    %7 = vector.extract_strided_slice %0 {offsets = [0, 1], sizes = [64, 1], strides = [1, 1]} : vector<64x3xf32> to vector<64x1xf32>
    %8 = vector.extract_strided_slice %1 {offsets = [1, 0], sizes = [1, 256], strides = [1, 1]} : vector<3x256xf32> to vector<1x256xf32>
    %9 = vector.broadcast %7 : vector<64x1xf32> to vector<64x256xf32>
    %10 = vector.broadcast %8 : vector<1x256xf32> to vector<64x256xf32>
    %11 = arith.mulf %9, %10 : vector<64x256xf32>
    %12 = arith.addf %6, %11 : vector<64x256xf32>
    %13 = vector.extract_strided_slice %0 {offsets = [0, 2], sizes = [64, 1], strides = [1, 1]} : vector<64x3xf32> to vector<64x1xf32>
    %14 = vector.extract_strided_slice %1 {offsets = [2, 0], sizes = [1, 256], strides = [1, 1]} : vector<3x256xf32> to vector<1x256xf32>
    %15 = vector.broadcast %13 : vector<64x1xf32> to vector<64x256xf32>
    %16 = vector.broadcast %14 : vector<1x256xf32> to vector<64x256xf32>
    %17 = arith.mulf %15, %16 : vector<64x256xf32>
    %18 = arith.addf %12, %17 : vector<64x256xf32>
    %c0_3 = arith.constant 0 : index
    %c0_4 = arith.constant 0 : index
    %19 = vector.load %arg3[%c0_3, %c0_4] : memref<1x256xf32, #tpu.memory_space<vmem>>, vector<1x256xf32>
    %20 = vector.broadcast %19 : vector<1x256xf32> to vector<64x256xf32>
    %21 = arith.addf %18, %20 : vector<64x256xf32>
    %cst = arith.constant 0.000000e+00 : f32
    %22 = vector.broadcast %cst : f32 to vector<64x256xf32>
    %23 = arith.maximumf %21, %22 : vector<64x256xf32>
    %c0_5 = arith.constant 0 : index
    %c0_6 = arith.constant 0 : index
    %24 = vector.load %arg4[%c0_5, %c0_6] : memref<256x108xf32, #tpu.memory_space<vmem>>, vector<256x108xf32>
    %cst_7 = arith.constant dense<0.000000e+00> : vector<64x108xf32>
    %25 = tpu.matmul %23, %24, %cst_7 {dimension_numbers = #tpu.dot_dimension_numbers<[1], [0], [0], [1], [0, 0, 1, 1], [], []>} : vector<64x256xf32>, vector<256x108xf32>, vector<64x108xf32> -> vector<64x108xf32>
    %c0_8 = arith.constant 0 : index
    %c0_9 = arith.constant 0 : index
    %26 = vector.load %arg5[%c0_8, %c0_9] : memref<1x108xf32, #tpu.memory_space<vmem>>, vector<1x108xf32>
    %27 = vector.broadcast %26 : vector<1x108xf32> to vector<64x108xf32>
    %28 = arith.addf %25, %27 : vector<64x108xf32>
    %c0_10 = arith.constant 0 : index
    %c0_11 = arith.constant 0 : index
    %29 = vector.load %arg6[%c0_10, %c0_11] : memref<64x108xf32, #tpu.memory_space<vmem>>, vector<64x108xf32>
    tpu.vector_store %arg6[%c0_10, %c0_11], %28 {strides = array<i32>} : memref<64x108xf32, #tpu.memory_space<vmem>>, vector<64x108xf32>,
    return
  }
  func.func @transform_0(%arg0: i32) -> (i32, i32) {
    %c0_i32 = arith.constant 0 : i32
    %c0_i32_0 = arith.constant 0 : i32
    return %arg0, %c0_i32 : i32, i32
  }
  func.func @transform_1(%arg0: i32) -> (i32, i32) {
    %c0_i32 = arith.constant 0 : i32
    %c0_i32_0 = arith.constant 0 : i32
    %c0_i32_1 = arith.constant 0 : i32
    return %c0_i32, %c0_i32_0 : i32, i32
  }
  func.func @transform_2(%arg0: i32) -> (i32, i32) {
    %c0_i32 = arith.constant 0 : i32
    %c0_i32_0 = arith.constant 0 : i32
    %c0_i32_1 = arith.constant 0 : i32
    return %c0_i32, %c0_i32_0 : i32, i32
  }
  func.func @transform_3(%arg0: i32) -> (i32, i32) {
    %c0_i32 = arith.constant 0 : i32
    %c0_i32_0 = arith.constant 0 : i32
    %c0_i32_1 = arith.constant 0 : i32
    return %c0_i32, %c0_i32_0 : i32, i32
  }
  func.func @transform_4(%arg0: i32) -> (i32, i32) {
    %c0_i32 = arith.constant 0 : i32
    %c0_i32_0 = arith.constant 0 : i32
    %c0_i32_1 = arith.constant 0 : i32
    return %c0_i32, %c0_i32_0 : i32, i32
  }
  func.func @transform_5(%arg0: i32) -> (i32, i32) {
    %c0_i32 = arith.constant 0 : i32
    %c0_i32_0 = arith.constant 0 : i32
    return %arg0, %c0_i32 : i32, i32
  }
}

</mosaic_0001>

<llo_original>
// kernel: tpu_custom_call.1
$region0: #{tpu_custom_call.1}
  #allocation0 [shape = 'u32[]', space=smem, size = 0x4, offset = 0x4, fixed_abs, tag = 'smem constant byte address 0x4 - core index']
  #allocation1 [shape = 'u32[144,128]{1,0:T(1,128)}', space=vmem, size = 0x12000, scoped, tag = 'internal scratch']
  %s0 = inlined_call_operand.vmem [shape: f32[64,3], index: 0, kind: input, shape index: {}]
  %s1 = inlined_call_operand.vmem [shape: f32[3,256], index: 1, kind: input, shape index: {}]
  %s2 = inlined_call_operand.vmem [shape: f32[1,256], index: 2, kind: input, shape index: {}]
  %s3 = inlined_call_operand.vmem [shape: f32[256,108], index: 3, kind: input, shape index: {}]
  %s4 = inlined_call_operand.vmem [shape: f32[1,108], index: 4, kind: input, shape index: {}]
  %s5 = inlined_call_operand.hbm [shape: f32[64,108], index: 5, kind: output, shape index: {}]
  %s6 = sld [smem:[#allocation0]]
  $region30: #{tpu_custom_call.1} parent=0
    _
  %s8 = ssub.s32 1, %s6
  %s9 = scalar_select 0, %s8, %s6
  $region1: #{tpu_custom_call.1} parent=0
    #allocation2 [shape = 'u8[32768]{0}', space=vmem, size = 0x8000, scoped, tag = 'output window, operand 0, single buffered']
    #allocation3 [shape = 's32[1]{0}', space=sflag, size = 0x4, scoped, tag = 'scoped memory for tpu_custom_call.1']
    %10 = vsyncpa [#allocation3], 0
    // Predicated region
    $region2: #{tpu_custom_call.1} parent=1 // pred_check
      _
    $region3: #{tpu_custom_call.1} parent=1 // pred_check_branch
      %12 = sbr.rel (0) target = $region5
    $region4: #{tpu_custom_call.1} parent=1 // pred_region
      _
    $region5: #{tpu_custom_call.1} parent=1 // pred_fallthru
      _
    // Predicated region
    $region6: #{tpu_custom_call.1} parent=1 // pred_check
      _
    $region7: #{tpu_custom_call.1} parent=1 // pred_check_branch
      %14 = sbr.rel (0) target = $region9
    $region8: #{tpu_custom_call.1} parent=1 // pred_region
      _
    $region9: #{tpu_custom_call.1} parent=1 // pred_fallthru
      _
    // Predicated region
    $region10: #{tpu_custom_call.1} parent=1 // pred_check
      _
    $region11: #{tpu_custom_call.1} parent=1 // pred_check_branch
      %16 = sbr.rel (0) target = $region13
    $region12: #{tpu_custom_call.1} parent=1 // pred_region
      _
    $region13: #{tpu_custom_call.1} parent=1 // pred_fallthru
      _
    // Predicated region
    $region14: #{tpu_custom_call.1} parent=1 // pred_check
      _
    $region15: #{tpu_custom_call.1} parent=1 // pred_check_branch
      %18 = sbr.rel (0) target = $region17
    $region16: #{tpu_custom_call.1} parent=1 // pred_region
      _
    $region17: #{tpu_custom_call.1} parent=1 // pred_fallthru
      _
    // Predicated region
    $region18: #{tpu_custom_call.1} parent=1 // pred_check
      _
    $region19: #{tpu_custom_call.1} parent=1 // pred_check_branch
      %20 = sbr.rel (0) target = $region21
    $region20: #{tpu_custom_call.1} parent=1 // pred_region
      _
    $region21: #{tpu_custom_call.1} parent=1 // pred_fallthru
      _
    %v21 = vld [vmem:[%s0] sm:$0xff]
    %v22 = vld [vmem:[%s0 + $0x8] sm:$0xff]
    %v23 = vld [vmem:[%s0 + $0x10] sm:$0xff]
    %v24 = vld [vmem:[%s0 + $0x18] sm:$0xff]
    %v25 = vld [vmem:[%s0 + $0x20] sm:$0xff]
    %v26 = vld [vmem:[%s0 + $0x28] sm:$0xff]
    %v27 = vld [vmem:[%s0 + $0x30] sm:$0xff]
    %v28 = vld [vmem:[%s0 + $0x38] sm:$0xff]
    %v29 = vld [vmem:[%s1] sm:$0x77]
    %31 = vset.pattern.permute.xlu0 0
    %32 = vperm.xlu0 %31, %v21
    %v33 = vpop.permute.xlu0 %32
    %36 = vset.pattern.permute.xlu0 0
    %37 = vperm.xlu0 %36, %v22
    %v38 = vpop.permute.xlu0 %37
    %41 = vset.pattern.permute.xlu0 0
    %42 = vperm.xlu0 %41, %v23
    %v43 = vpop.permute.xlu0 %42
    %46 = vset.pattern.permute.xlu0 0
    %47 = vperm.xlu0 %46, %v24
    %v48 = vpop.permute.xlu0 %47
    %51 = vset.pattern.permute.xlu0 0
    %52 = vperm.xlu0 %51, %v25
    %v53 = vpop.permute.xlu0 %52
    %56 = vset.pattern.permute.xlu0 0
    %57 = vperm.xlu0 %56, %v26
    %v58 = vpop.permute.xlu0 %57
    %61 = vset.pattern.permute.xlu0 0
    %62 = vperm.xlu0 %61, %v27
    %v63 = vpop.permute.xlu0 %62
    %66 = vset.pattern.permute.xlu0 0
    %67 = vperm.xlu0 %66, %v28
    %v68 = vpop.permute.xlu0 %67
    %v71 = vlaneseq
    %v72 = vshrl.u32 %v71, 7
    %v73 = vsub.s32 0, %v72
    %v74 = vrot.slane %v29, %v73
    %v75 = vlaneseq
    %v76 = vshrl.u32 %v75, 7
    %v77 = vsub.s32 4, %v76
    %v78 = vrot.slane %v29, %v77
    %v81 = vlaneseq
    %v82 = vshrl.u32 %v81, 7
    %v83 = vsub.s32 0, %v82
    %v84 = vrot.slane %v74, %v83
    %v85 = vlaneseq
    %v86 = vshrl.u32 %v85, 7
    %v87 = vsub.s32 0, %v86
    %v88 = vrot.slane %v78, %v87
    %v89 = vmul.f32 %v33, %v84
    %v90 = vmul.f32 %v33, %v88
    %v91 = vmul.f32 %v38, %v84
    %v92 = vmul.f32 %v38, %v88
    %v93 = vmul.f32 %v43, %v84
    %v94 = vmul.f32 %v43, %v88
    %v95 = vmul.f32 %v48, %v84
    %v96 = vmul.f32 %v48, %v88
    %v97 = vmul.f32 %v53, %v84
    %v98 = vmul.f32 %v53, %v88
    %v99 = vmul.f32 %v58, %v84
    %v100 = vmul.f32 %v58, %v88
    %v101 = vmul.f32 %v63, %v84
    %v102 = vmul.f32 %v63, %v88
    %v103 = vmul.f32 %v68, %v84
    %v104 = vmul.f32 %v68, %v88
    %105 = vset.pattern.permute.xlu0 1
    %106 = vperm.xlu0 %105, %v21
    %v107 = vpop.permute.xlu0 %106
    %109 = vset.pattern.permute.xlu0 1
    %110 = vperm.xlu0 %109, %v22
    %v111 = vpop.permute.xlu0 %110
    %113 = vset.pattern.permute.xlu0 1
    %114 = vperm.xlu0 %113, %v23
    %v115 = vpop.permute.xlu0 %114
    %117 = vset.pattern.permute.xlu0 1
    %118 = vperm.xlu0 %117, %v24
    %v119 = vpop.permute.xlu0 %118
    %121 = vset.pattern.permute.xlu0 1
    %122 = vperm.xlu0 %121, %v25
    %v123 = vpop.permute.xlu0 %122
    %125 = vset.pattern.permute.xlu0 1
    %126 = vperm.xlu0 %125, %v26
    %v127 = vpop.permute.xlu0 %126
    %129 = vset.pattern.permute.xlu0 1
    %130 = vperm.xlu0 %129, %v27
    %v131 = vpop.permute.xlu0 %130
    %133 = vset.pattern.permute.xlu0 1
    %134 = vperm.xlu0 %133, %v28
    %v135 = vpop.permute.xlu0 %134
    %v137 = vlaneseq
    %v138 = vshrl.u32 %v137, 7
    %v139 = vsub.s32 1, %v138
    %v140 = vrot.slane %v29, %v139
    %v141 = vlaneseq
    %v142 = vshrl.u32 %v141, 7
    %v143 = vsub.s32 5, %v142
    %v144 = vrot.slane %v29, %v143
    %v147 = vlaneseq
    %v148 = vshrl.u32 %v147, 7
    %v149 = vsub.s32 1, %v148
    %v150 = vrot.slane %v140, %v149
    %v151 = vlaneseq
    %v152 = vshrl.u32 %v151, 7
    %v153 = vsub.s32 1, %v152
    %v154 = vrot.slane %v144, %v153
    %v155 = vmul.f32 %v107, %v150
    %v156 = vmul.f32 %v107, %v154
    %v157 = vmul.f32 %v111, %v150
    %v158 = vmul.f32 %v111, %v154
    %v159 = vmul.f32 %v115, %v150
    %v160 = vmul.f32 %v115, %v154
    %v161 = vmul.f32 %v119, %v150
    %v162 = vmul.f32 %v119, %v154
    %v163 = vmul.f32 %v123, %v150
    %v164 = vmul.f32 %v123, %v154
    %v165 = vmul.f32 %v127, %v150
    %v166 = vmul.f32 %v127, %v154
    %v167 = vmul.f32 %v131, %v150
    %v168 = vmul.f32 %v131, %v154
    %v169 = vmul.f32 %v135, %v150
    %v170 = vmul.f32 %v135, %v154
    %v171 = vadd.f32 %v89, %v155
    %v172 = vadd.f32 %v90, %v156
    %v173 = vadd.f32 %v91, %v157
    %v174 = vadd.f32 %v92, %v158
    %v175 = vadd.f32 %v93, %v159
    %v176 = vadd.f32 %v94, %v160
    %v177 = vadd.f32 %v95, %v161
    %v178 = vadd.f32 %v96, %v162
    %v179 = vadd.f32 %v97, %v163
    %v180 = vadd.f32 %v98, %v164
    %v181 = vadd.f32 %v99, %v165
    %v182 = vadd.f32 %v100, %v166
    %v183 = vadd.f32 %v101, %v167
    %v184 = vadd.f32 %v102, %v168
    %v185 = vadd.f32 %v103, %v169
    %v186 = vadd.f32 %v104, %v170
    %187 = vset.pattern.permute.xlu0 2
    %188 = vperm.xlu0 %187, %v21
    %v189 = vpop.permute.xlu0 %188
    %191 = vset.pattern.permute.xlu0 2
    %192 = vperm.xlu0 %191, %v22
    %v193 = vpop.permute.xlu0 %192
    %195 = vset.pattern.permute.xlu0 2
    %196 = vperm.xlu0 %195, %v23
    %v197 = vpop.permute.xlu0 %196
    %199 = vset.pattern.permute.xlu0 2
    %200 = vperm.xlu0 %199, %v24
    %v201 = vpop.permute.xlu0 %200
    %203 = vset.pattern.permute.xlu0 2
    %204 = vperm.xlu0 %203, %v25
    %v205 = vpop.permute.xlu0 %204
    %207 = vset.pattern.permute.xlu0 2
    %208 = vperm.xlu0 %207, %v26
    %v209 = vpop.permute.xlu0 %208
    %211 = vset.pattern.permute.xlu0 2
    %212 = vperm.xlu0 %211, %v27
    %v213 = vpop.permute.xlu0 %212
    %215 = vset.pattern.permute.xlu0 2
    %216 = vperm.xlu0 %215, %v28
    %v217 = vpop.permute.xlu0 %216
    %v219 = vlaneseq
    %v220 = vshrl.u32 %v219, 7
    %v221 = vsub.s32 2, %v220
    %v222 = vrot.slane %v29, %v221
    %v223 = vlaneseq
    %v224 = vshrl.u32 %v223, 7
    %v225 = vsub.s32 6, %v224
    %v226 = vrot.slane %v29, %v225
    %v229 = vlaneseq
    %v230 = vshrl.u32 %v229, 7
    %v231 = vsub.s32 2, %v230
    %v232 = vrot.slane %v222, %v231
    %v233 = vlaneseq
    %v234 = vshrl.u32 %v233, 7
    %v235 = vsub.s32 2, %v234
    %v236 = vrot.slane %v226, %v235
    %v237 = vmul.f32 %v189, %v232
    %v238 = vmul.f32 %v189, %v236
    %v239 = vmul.f32 %v193, %v232
    %v240 = vmul.f32 %v193, %v236
    %v241 = vmul.f32 %v197, %v232
    %v242 = vmul.f32 %v197, %v236
    %v243 = vmul.f32 %v201, %v232
    %v244 = vmul.f32 %v201, %v236
    %v245 = vmul.f32 %v205, %v232
    %v246 = vmul.f32 %v205, %v236
    %v247 = vmul.f32 %v209, %v232
    %v248 = vmul.f32 %v209, %v236
    %v249 = vmul.f32 %v213, %v232
    %v250 = vmul.f32 %v213, %v236
    %v251 = vmul.f32 %v217, %v232
    %v252 = vmul.f32 %v217, %v236
    %v253 = vadd.f32 %v171, %v237
    %v254 = vadd.f32 %v172, %v238
    %v255 = vadd.f32 %v173, %v239
    %v256 = vadd.f32 %v174, %v240
    %v257 = vadd.f32 %v175, %v241
    %v258 = vadd.f32 %v176, %v242
    %v259 = vadd.f32 %v177, %v243
    %v260 = vadd.f32 %v178, %v244
    %v261 = vadd.f32 %v179, %v245
    %v262 = vadd.f32 %v180, %v246
    %v263 = vadd.f32 %v181, %v247
    %v264 = vadd.f32 %v182, %v248
    %v265 = vadd.f32 %v183, %v249
    %v266 = vadd.f32 %v184, %v250
    %v267 = vadd.f32 %v185, %v251
    %v268 = vadd.f32 %v186, %v252
    %v269 = vld [vmem:[%s2] sm:$0x3]
    %v271 = vlaneseq
    %v272 = vshrl.u32 %v271, 7
    %v273 = vsub.s32 0, %v272
    %v274 = vrot.slane %v269, %v273
    %v275 = vlaneseq
    %v276 = vshrl.u32 %v275, 7
    %v277 = vsub.s32 1, %v276
    %v278 = vrot.slane %v269, %v277
    %v281 = vadd.f32 %v253, %v274
    %v282 = vadd.f32 %v254, %v278
    %v283 = vadd.f32 %v255, %v274
    %v284 = vadd.f32 %v256, %v278
    %v285 = vadd.f32 %v257, %v274
    %v286 = vadd.f32 %v258, %v278
    %v287 = vadd.f32 %v259, %v274
    %v288 = vadd.f32 %v260, %v278
    %v289 = vadd.f32 %v261, %v274
    %v290 = vadd.f32 %v262, %v278
    %v291 = vadd.f32 %v263, %v274
    %v292 = vadd.f32 %v264, %v278
    %v293 = vadd.f32 %v265, %v274
    %v294 = vadd.f32 %v266, %v278
    %v295 = vadd.f32 %v267, %v274
    %v296 = vadd.f32 %v268, %v278
    %v297 = vmax.f32 %v281, 0.0
    %v298 = vmax.f32 %v282, 0.0
    %v299 = vmax.f32 %v283, 0.0
    %v300 = vmax.f32 %v284, 0.0
    %v301 = vmax.f32 %v285, 0.0
    %v302 = vmax.f32 %v286, 0.0
    %v303 = vmax.f32 %v287, 0.0
    %v304 = vmax.f32 %v288, 0.0
    %v305 = vmax.f32 %v289, 0.0
    %v306 = vmax.f32 %v290, 0.0
    %v307 = vmax.f32 %v291, 0.0
    %v308 = vmax.f32 %v292, 0.0
    %v309 = vmax.f32 %v293, 0.0
    %v310 = vmax.f32 %v294, 0.0
    %v311 = vmax.f32 %v295, 0.0
    %v312 = vmax.f32 %v296, 0.0
    %v313 = vld [vmem:[%s3] sm:$0xff]
    %v314 = vld [vmem:[%s3 + $0x8] sm:$0xff]
    %v315 = vld [vmem:[%s3 + $0x10] sm:$0xff]
    %v316 = vld [vmem:[%s3 + $0x18] sm:$0xff]
    %v317 = vld [vmem:[%s3 + $0x20] sm:$0xff]
    %v318 = vld [vmem:[%s3 + $0x28] sm:$0xff]
    %v319 = vld [vmem:[%s3 + $0x30] sm:$0xff]
    %v320 = vld [vmem:[%s3 + $0x38] sm:$0xff]
    %v321 = vld [vmem:[%s3 + $0x40] sm:$0xff]
    %v322 = vld [vmem:[%s3 + $0x48] sm:$0xff]
    %v323 = vld [vmem:[%s3 + $0x50] sm:$0xff]
    %v324 = vld [vmem:[%s3 + $0x58] sm:$0xff]
    %v325 = vld [vmem:[%s3 + $0x60] sm:$0xff]
    %v326 = vld [vmem:[%s3 + $0x68] sm:$0xff]
    %v327 = vld [vmem:[%s3 + $0x70] sm:$0xff]
    %v328 = vld [vmem:[%s3 + $0x78] sm:$0xff]
    %v329 = vld [vmem:[%s3 + $0x80] sm:$0xff]
    %v330 = vld [vmem:[%s3 + $0x88] sm:$0xff]
    %v331 = vld [vmem:[%s3 + $0x90] sm:$0xff]
    %v332 = vld [vmem:[%s3 + $0x98] sm:$0xff]
    %v333 = vld [vmem:[%s3 + $0xa0] sm:$0xff]
    %v334 = vld [vmem:[%s3 + $0xa8] sm:$0xff]
    %v335 = vld [vmem:[%s3 + $0xb0] sm:$0xff]
    %v336 = vld [vmem:[%s3 + $0xb8] sm:$0xff]
    %v337 = vld [vmem:[%s3 + $0xc0] sm:$0xff]
    %v338 = vld [vmem:[%s3 + $0xc8] sm:$0xff]
    %v339 = vld [vmem:[%s3 + $0xd0] sm:$0xff]
    %v340 = vld [vmem:[%s3 + $0xd8] sm:$0xff]
    %v341 = vld [vmem:[%s3 + $0xe0] sm:$0xff]
    %v342 = vld [vmem:[%s3 + $0xe8] sm:$0xff]
    %v343 = vld [vmem:[%s3 + $0xf0] sm:$0xff]
    %v344 = vld [vmem:[%s3 + $0xf8] sm:$0xff]
    %v345 = vld [vmem:[%s4] sm:$0x1]
    %v347 = vlaneseq
    %v348 = vshrl.u32 %v347, 7
    %v349 = vsub.s32 0, %v348
    %v350 = vrot.slane %v345, %v349
    %352 = vmatprep.subr.mxu0 0.0
    %353 = vmatpush1.msra.mxu0 %v328
    %354 = vmatprep.subr.mxu0 0.0
    %355 = vmatpush1.msra.mxu0 %v327
    %356 = vmatprep.subr.mxu0 0.0
    %357 = vmatpush1.msra.mxu0 %v326
    %358 = vmatprep.subr.mxu0 0.0
    %359 = vmatpush1.msra.mxu0 %v325
    %360 = vmatprep.subr.mxu0 0.0
    %361 = vmatpush1.msra.mxu0 %v324
    %362 = vmatprep.subr.mxu0 0.0
    %363 = vmatpush1.msra.mxu0 %v323
    %364 = vmatprep.subr.mxu0 0.0
    %365 = vmatpush1.msra.mxu0 %v322
    %366 = vmatprep.subr.mxu0 0.0
    %367 = vmatpush1.msra.mxu0 %v321
    %368 = vmatprep.subr.mxu0 0.0
    %369 = vmatpush1.msra.mxu0 %v320
    %370 = vmatprep.subr.mxu0 0.0
    %371 = vmatpush1.msra.mxu0 %v319
    %372 = vmatprep.subr.mxu0 0.0
    %373 = vmatpush1.msra.mxu0 %v318
    %374 = vmatprep.subr.mxu0 0.0
    %375 = vmatpush1.msra.mxu0 %v317
    %376 = vmatprep.subr.mxu0 0.0
    %377 = vmatpush1.msra.mxu0 %v316
    %378 = vmatprep.subr.mxu0 0.0
    %379 = vmatpush1.msra.mxu0 %v315
    %380 = vmatprep.subr.mxu0 0.0
    %381 = vmatpush1.msra.mxu0 %v314
    %382 = vmatprep.subr.mxu0 0.0
    %383 = vmatpush1.msra.mxu0 %v313
    %384 = vmatprep.subr.mxu0 0.0
    %385 = vmatpush2.msra.mxu0 %v344
    %386 = vmatprep.subr.mxu0 0.0
    %387 = vmatpush2.msra.mxu0 %v343
    %388 = vmatprep.subr.mxu0 0.0
    %389 = vmatpush2.msra.mxu0 %v342
    %390 = vmatprep.subr.mxu0 0.0
    %391 = vmatpush2.msra.mxu0 %v341
    %392 = vmatprep.subr.mxu0 0.0
    %393 = vmatpush2.msra.mxu0 %v340
    %394 = vmatprep.subr.mxu0 0.0
    %395 = vmatpush2.msra.mxu0 %v339
    %396 = vmatprep.subr.mxu0 0.0
    %397 = vmatpush2.msra.mxu0 %v338
    %398 = vmatprep.subr.mxu0 0.0
    %399 = vmatpush2.msra.mxu0 %v337
    %400 = vmatprep.subr.mxu0 0.0
    %401 = vmatpush2.msra.mxu0 %v336
    %402 = vmatprep.subr.mxu0 0.0
    %403 = vmatpush2.msra.mxu0 %v335
    %404 = vmatprep.subr.mxu0 0.0
    %405 = vmatpush2.msra.mxu0 %v334
    %406 = vmatprep.subr.mxu0 0.0
    %407 = vmatpush2.msra.mxu0 %v333
    %408 = vmatprep.subr.mxu0 0.0
    %409 = vmatpush2.msra.mxu0 %v332
    %410 = vmatprep.subr.mxu0 0.0
    %411 = vmatpush2.msra.mxu0 %v331
    %412 = vmatprep.subr.mxu0 0.0
    %413 = vmatpush2.msra.mxu0 %v330
    %414 = vmatprep.subr.mxu0 0.0
    %415 = vmatpush2.msra.mxu0 %v329
    %416 = vmatprep.mubr.f32.mxu0 %v298
    %417 = vmatmul.mubr.f32.gmra.mxu0 %v297
    %v418 = vpop.f32.mrf.mxu0
    %v419 = vadd.f32 %v350, %v418
    %v420 = vpop.f32.mrf.mxu0
    %421 = vmatprep.mubr.f32.mxu0 %v300
    %422 = vmatmul.mubr.f32.gmra.mxu0 %v299
    %v423 = vpop.f32.mrf.mxu0
    %v424 = vadd.f32 %v350, %v423
    %v425 = vpop.f32.mrf.mxu0
    %426 = vmatprep.mubr.f32.mxu0 %v302
    %427 = vmatmul.mubr.f32.gmra.mxu0 %v301
    %v428 = vpop.f32.mrf.mxu0
    %v429 = vadd.f32 %v350, %v428
    %v430 = vpop.f32.mrf.mxu0
    %431 = vmatprep.mubr.f32.mxu0 %v304
    %432 = vmatmul.mubr.f32.gmra.mxu0 %v303
    %v433 = vpop.f32.mrf.mxu0
    %v434 = vadd.f32 %v350, %v433
    %v435 = vpop.f32.mrf.mxu0
    %436 = vmatprep.mubr.f32.mxu0 %v306
    %437 = vmatmul.mubr.f32.gmra.mxu0 %v305
    %v438 = vpop.f32.mrf.mxu0
    %v439 = vadd.f32 %v350, %v438
    %v440 = vpop.f32.mrf.mxu0
    %441 = vmatprep.mubr.f32.mxu0 %v308
    %442 = vmatmul.mubr.f32.gmra.mxu0 %v307
    %v443 = vpop.f32.mrf.mxu0
    %v444 = vadd.f32 %v350, %v443
    %v445 = vpop.f32.mrf.mxu0
    %446 = vmatprep.mubr.f32.mxu0 %v310
    %447 = vmatmul.mubr.f32.gmra.mxu0 %v309
    %v448 = vpop.f32.mrf.mxu0
    %v449 = vadd.f32 %v350, %v448
    %v450 = vpop.f32.mrf.mxu0
    %451 = vmatprep.mubr.f32.mxu0 %v312
    %452 = vmatmul.mubr.f32.gmra.mxu0 %v311
    %v453 = vpop.f32.mrf.mxu0
    %v454 = vadd.f32 %v350, %v453
    %v455 = vpop.f32.mrf.mxu0
    %456 = vdwg.mxu0
    %vm457 = vcmask 883712
    %458 = vst.msk [vmem:[#allocation2] sm:$0xff] %vm457, %v419
    %459 = vst.msk [vmem:[#allocation2 + $0x8] sm:$0xff] %vm457, %v424
    %460 = vst.msk [vmem:[#allocation2 + $0x10] sm:$0xff] %vm457, %v429
    %461 = vst.msk [vmem:[#allocation2 + $0x18] sm:$0xff] %vm457, %v434
    %462 = vst.msk [vmem:[#allocation2 + $0x20] sm:$0xff] %vm457, %v439
    %463 = vst.msk [vmem:[#allocation2 + $0x28] sm:$0xff] %vm457, %v444
    %464 = vst.msk [vmem:[#allocation2 + $0x30] sm:$0xff] %vm457, %v449
    %465 = vst.msk [vmem:[#allocation2 + $0x38] sm:$0xff] %vm457, %v454
    // Predicated region
    $region22: #{tpu_custom_call.1} parent=1 // pred_check
      _
    $region23: #{tpu_custom_call.1} parent=1 // pred_check_branch
      %467 = sbr.rel (0) target = $region25
    $region24: #{tpu_custom_call.1} parent=1 // pred_region
      %s469 = ssub.s32 1024, 1024
      %470 = vsyncadd [#allocation3], %s469
      %s471 = sshll.u32 [#allocation2], 4
      %s472 = int_to_ptr.vmem [resolvable:$true] %s471
      %477 = dma.vmem_to_hbm [thread:$0]  %s472, 1024, %s5, [#allocation3], 128, 128, 8
    $region25: #{tpu_custom_call.1} parent=1 // pred_fallthru
      _
    // Predicated region
    $region26: #{tpu_custom_call.1} parent=1 // pred_check
      _
    $region27: #{tpu_custom_call.1} parent=1 // pred_check_branch
      %479 = sbr.rel (0) target = $region29
    $region28: #{tpu_custom_call.1} parent=1 // pred_region
      %480 = dma.done [#allocation3], 1024
    $region29: #{tpu_custom_call.1} parent=1 // pred_fallthru
      _
    %481 = vsyncpa [#allocation3], 1

</llo_original>
